<compile_context>
chip_gen: v5e
topology: v5e:2x2
jax: 0.10.0
libtpu: 0.0.40
codegen_flags: <defaults>
</compile_context>

<pallas_src>
import functools

import jax
import jax.numpy as jnp
from jax.experimental import pallas as pl
from jax.experimental.pallas import tpu as pltpu


def _round_up(x: int, m: int) -> int:
    return (x + m - 1) // m * m


def _pick_tile(desired: int, total: int, align: int) -> int:
    """Multiple of `align` dividing `total` (itself a multiple of `align`),
    as close to `desired` as possible, never exceeding 4*desired."""
    desired = max(_round_up(desired, align), align)
    best = align
    t = align
    while t <= total and t <= 4 * desired:
        if total % t == 0 and abs(t - desired) < abs(best - desired):
            best = t
        t += align
    return best


# ---------------------------------------------------------------- kernels ---

def _mlp_kernel_acc(x_ref, w_ref, b_ref, o_ref, acc_ref):
    """Variant with an f32 VMEM accumulator (used when out dtype != f32)."""
    k = pl.program_id(2)

    @pl.when(k == 0)
    def _init():
        acc_ref[...] = jnp.zeros_like(acc_ref)

    acc_ref[...] += jnp.dot(x_ref[...], w_ref[...],
                            preferred_element_type=jnp.float32)

    @pl.when(k == pl.num_programs(2) - 1)
    def _epilogue():
        o_ref[...] = (acc_ref[...] + b_ref[...]).astype(o_ref.dtype)


def _mlp_kernel_f32_out(x_ref, w_ref, b_ref, o_ref):
    """Variant accumulating directly into the resident f32 output block."""
    k = pl.program_id(2)

    @pl.when(k == 0)
    def _init():
        o_ref[...] = jnp.zeros_like(o_ref)

    o_ref[...] += jnp.dot(x_ref[...], w_ref[...],
                          preferred_element_type=jnp.float32)

    @pl.when(k == pl.num_programs(2) - 1)
    def _epilogue():
        o_ref[...] += b_ref[...]


# ---------------------------------------------------------------- wrapper ---

@functools.partial(jax.jit,
                   static_argnames=("n_out", "tm", "tn", "tk", "compute_dtype"))
def _mlp_forward_padded(x, w_kn, bias2d, *, n_out, tm, tn, tk, compute_dtype):
    """x: [B, K]; w_kn: [Kp, Np] pre-transposed/padded weight; bias2d: [1, Np] f32."""
    B, K = x.shape
    Kp, Np = w_kn.shape
    out_dtype = x.dtype
    cdt = jnp.dtype(compute_dtype) if compute_dtype is not None else jnp.dtype(x.dtype)

    # Sublane alignment for the batch (M) tile depends on the compute dtype:
    # f32 -> 8 rows, bf16 -> 16 rows, int8/fp8 -> 32 rows.
    sub = {4: 8, 2: 16, 1: 32}.get(cdt.itemsize, 8)

    tm_eff = max(sub, min(_round_up(tm, sub), _round_up(B, sub)))
    Mp = _round_up(B, tm_eff)
    tn_eff = _pick_tile(tn, Np, 128)
    tk_eff = _pick_tile(tk, Kp, 128)

    # v7x megacore: expose >= 2 blocks along a parallel axis when possible.
    if Mp // tm_eff == 1 and Np // tn_eff == 1 and Np >= 256:
        tn_eff = _pick_tile(Np // 2, Np, 128)

    grid = (Mp // tm_eff, Np // tn_eff, Kp // tk_eff)
    gm, gn, gk = grid

    # Hot-path padding only where unavoidable (batch rows / non-128-aligned K).
    xp = x
    if Mp != B or Kp != K:
        xp = jnp.pad(x, ((0, Mp - B), (0, Kp - K)))
    if xp.dtype != cdt:
        xp = xp.astype(cdt)
    wq = w_kn if w_kn.dtype == cdt else w_kn.astype(cdt)

    cbytes = cdt.itemsize
    obytes = jnp.dtype(out_dtype).itemsize
    cost = pl.CostEstimate(
        flops=2 * Mp * Np * Kp,
        transcendentals=0,
        bytes_accessed=(Mp * Kp * cbytes * gn      # x re-streamed per N tile
                        + Kp * Np * cbytes * gm    # W re-streamed per M tile
                        + Mp * Np * obytes
                        + Np * 4 * gm),
    )

    use_scratch = jnp.dtype(out_dtype) != jnp.float32
    kernel = _mlp_kernel_acc if use_scratch else _mlp_kernel_f32_out
    scratch = [pltpu.VMEM((tm_eff, tn_eff), jnp.float32)] if use_scratch else []

    # Double-buffered inputs + double-buffered output (+ optional f32 scratch).
    vmem_need = (2 * (tm_eff * tk_eff * cbytes + tk_eff * tn_eff * cbytes + tn_eff * 4)
                 + 2 * tm_eff * tn_eff * obytes
                 + (tm_eff * tn_eff * 4 if use_scratch else 0))
    vmem_limit = int(min(max(2 * vmem_need, 32 << 20), 64 << 20))

    out = pl.pallas_call(
        kernel,
        out_shape=jax.ShapeDtypeStruct((Mp, Np), out_dtype),
        grid_spec=pltpu.PrefetchScalarGridSpec(
            num_scalar_prefetch=0,
            grid=grid,
            in_specs=[
                pl.BlockSpec((tm_eff, tk_eff), lambda i, j, k: (i, k)),   # x tile
                pl.BlockSpec((tk_eff, tn_eff), lambda i, j, k: (k, j)),   # W tile ([K, N])
                pl.BlockSpec((1, tn_eff), lambda i, j, k: (0, j)),        # bias tile
            ],
            out_specs=pl.BlockSpec((tm_eff, tn_eff), lambda i, j, k: (i, j)),
            scratch_shapes=scratch,
        ),
        compiler_params=pltpu.CompilerParams(
            dimension_semantics=("parallel", "parallel", "arbitrary"),
            vmem_limit_bytes=vmem_limit,
        ),
        cost_estimate=cost,
    )(xp, wq, bias2d)

    if Mp != B or Np != n_out:
        out = out[:B, :n_out]
    return out


class PallasMLP:
    """Pallas TPU equivalent of the PyTorch MLP (single nn.Linear).

    Weight transpose / padding and bias padding are done once here, outside
    the jitted hot path (the static weight cost is amortized over calls).
    """

    def __init__(self, weight, bias, *, tm=512, tn=1024, tk=512, compute_dtype=None):
        weight = jnp.asarray(weight)
        bias = jnp.asarray(bias)
        N, K = weight.shape
        assert bias.shape == (N,)
        Np, Kp = _round_up(N, 128), _round_up(K, 128)

        w = weight
        if (Np, Kp) != (N, K):
            w = jnp.pad(w, ((0, Np - N), (0, Kp - K)))
        w_kn = jnp.asarray(w.T)                      # [Kp, Np], one-time transpose
        if compute_dtype is not None:
            w_kn = w_kn.astype(compute_dtype)

        b = bias if Np == N else jnp.pad(bias, (0, Np - N))
        self.w_kn = w_kn
        self.bias2d = b.reshape(1, Np).astype(jnp.float32)
        self.n_out = N
        self.tm, self.tn, self.tk = tm, tn, tk
        self.compute_dtype = compute_dtype

    def __call__(self, x):
        # x.clone() in the PyTorch forward is a no-op under JAX's functional semantics.
        return _mlp_forward_padded(
            x, self.w_kn, self.bias2d, n_out=self.n_out,
            tm=self.tm, tn=self.tn, tk=self.tk, compute_dtype=self.compute_dtype)


# ------------------------------------------------------------------- demo ---

if __name__ == "__main__":
    key = jax.random.PRNGKey(0)
    kx, kw, kb, kx2, kw2, kb2 = jax.random.split(key, 6)

    # ---- Small shapes consistent with MLP(input_dim, output_dim) ----
    batch, input_dim, output_dim = 8, 32, 32
    bound = 1.0 / (input_dim ** 0.5)
    x = jax.random.normal(kx, (batch, input_dim), dtype=jnp.float32)
    weight = jax.random.uniform(kw, (output_dim, input_dim), dtype=jnp.float32,
                                minval=-bound, maxval=bound)
    bias = jax.random.uniform(kb, (output_dim,), dtype=jnp.float32,
                              minval=-bound, maxval=bound)

    mlp = PallasMLP(weight, bias)
    out = mlp(x)
    jax.block_until_ready(out)
    ref = x @ weight.T + bias
    assert out.shape == (batch, output_dim)
    assert jnp.allclose(out, ref, atol=1e-5, rtol=1e-5), "small-shape mismatch vs reference"

    # ---- Larger shapes to exercise the tiled (M, N, K) grid, f32 path ----
    B2, K2, N2 = 384, 640, 768
    bound2 = 1.0 / (K2 ** 0.5)
    x2 = jax.random.normal(kx2, (B2, K2), dtype=jnp.float32)
    w2 = jax.random.uniform(kw2, (N2, K2), dtype=jnp.float32,
                            minval=-bound2, maxval=bound2)
    b2 = jax.random.uniform(kb2, (N2,), dtype=jnp.float32,
                            minval=-bound2, maxval=bound2)

    mlp2 = PallasMLP(w2, b2)
    out2 = mlp2(x2)
    jax.block_until_ready(out2)
    ref2 = x2 @ w2.T + b2
    assert out2.shape == (B2, N2)
    assert jnp.allclose(out2, ref2, atol=1e-3, rtol=1e-3), "tiled-shape mismatch vs reference"

    # ---- bf16 compute path (f32 accumulation + f32 output kept) ----
    mlp3 = PallasMLP(w2, b2, compute_dtype=jnp.bfloat16)
    out3 = mlp3(x2)
    jax.block_until_ready(out3)
    assert out3.shape == (B2, N2) and out3.dtype == jnp.float32
    assert jnp.allclose(out3, ref2, atol=5e-2, rtol=5e-2), "bf16-path mismatch vs reference"

    print("KERNEL_OK")
</pallas_src>

<mosaic_0001>
module attributes {stable_mosaic.version = 11 : i64} {
  func.func @_mlp_kernel_f32_out(%arg0: i32, %arg1: i32, %arg2: i32, %arg3: memref<8x128xf32, #tpu.memory_space<vmem>>, %arg4: memref<128x128xf32, #tpu.memory_space<vmem>>, %arg5: memref<1x128xf32, #tpu.memory_space<vmem>>, %arg6: memref<8x128xf32, #tpu.memory_space<vmem>>) attributes {dimension_semantics = [#tpu.dimension_semantics<parallel>, #tpu.dimension_semantics<parallel>, #tpu.dimension_semantics<arbitrary>], iteration_bounds = array<i64: 1, 1, 1>, scalar_prefetch = 0 : i64, scratch_operands = 0 : i64, tpu.core_type = #tpu.core_type<tc>, window_params = [{transform_indices = @transform_0, window_bounds = array<i64: 8, 128>}, {transform_indices = @transform_1, window_bounds = array<i64: 128, 128>}, {transform_indices = @transform_2, window_bounds = array<i64: 1, 128>}, {transform_indices = @transform_3, window_bounds = array<i64: 8, 128>}]} {
    %c0_i32 = arith.constant 0 : i32
    %0 = arith.cmpi eq, %arg2, %c0_i32 : i32
    %1 = arith.extui %0 : i1 to i32
    %c0_i32_0 = arith.constant 0 : i32
    %2 = arith.cmpi ne, %1, %c0_i32_0 : i32
    scf.if %2 {
      %cst_10 = arith.constant 0.000000e+00 : f32
      %12 = vector.broadcast %cst_10 : f32 to vector<8x128xf32>
      %c0_11 = arith.constant 0 : index
      %c0_12 = arith.constant 0 : index
      %13 = vector.load %arg6[%c0_11, %c0_12] : memref<8x128xf32, #tpu.memory_space<vmem>>, vector<8x128xf32>
      tpu.vector_store %arg6[%c0_11, %c0_12], %12 {strides = array<i32>} : memref<8x128xf32, #tpu.memory_space<vmem>>, vector<8x128xf32>,
    } else {
    }
    %c0 = arith.constant 0 : index
    %c0_1 = arith.constant 0 : index
    %3 = vector.load %arg6[%c0, %c0_1] : memref<8x128xf32, #tpu.memory_space<vmem>>, vector<8x128xf32>
    %c0_2 = arith.constant 0 : index
    %c0_3 = arith.constant 0 : index
    %4 = vector.load %arg3[%c0_2, %c0_3] : memref<8x128xf32, #tpu.memory_space<vmem>>, vector<8x128xf32>
    %c0_4 = arith.constant 0 : index
    %c0_5 = arith.constant 0 : index
    %5 = vector.load %arg4[%c0_4, %c0_5] : memref<128x128xf32, #tpu.memory_space<vmem>>, vector<128x128xf32>
    %cst = arith.constant dense<0.000000e+00> : vector<8x128xf32>
    %6 = tpu.matmul %4, %5, %cst {dimension_numbers = #tpu.dot_dimension_numbers<[1], [0], [0], [1], [0, 0, 1, 1], [], []>} : vector<8x128xf32>, vector<128x128xf32>, vector<8x128xf32> -> vector<8x128xf32>
    %7 = arith.addf %3, %6 : vector<8x128xf32>
    %c0_6 = arith.constant 0 : index
    %c0_7 = arith.constant 0 : index
    %8 = vector.load %arg6[%c0_6, %c0_7] : memref<8x128xf32, #tpu.memory_space<vmem>>, vector<8x128xf32>
    tpu.vector_store %arg6[%c0_6, %c0_7], %7 {strides = array<i32>} : memref<8x128xf32, #tpu.memory_space<vmem>>, vector<8x128xf32>,
    %c0_i32_8 = arith.constant 0 : i32
    %9 = arith.cmpi eq, %arg2, %c0_i32_8 : i32
    %10 = arith.extui %9 : i1 to i32
    %c0_i32_9 = arith.constant 0 : i32
    %11 = arith.cmpi ne, %10, %c0_i32_9 : i32
    scf.if %11 {
      %c0_10 = arith.constant 0 : index
      %c0_11 = arith.constant 0 : index
      %12 = vector.load %arg6[%c0_10, %c0_11] : memref<8x128xf32, #tpu.memory_space<vmem>>, vector<8x128xf32>
      %c0_12 = arith.constant 0 : index
      %c0_13 = arith.constant 0 : index
      %13 = vector.load %arg5[%c0_12, %c0_13] : memref<1x128xf32, #tpu.memory_space<vmem>>, vector<1x128xf32>
      %14 = vector.broadcast %13 : vector<1x128xf32> to vector<8x128xf32>
      %15 = arith.addf %12, %14 : vector<8x128xf32>
      %c0_14 = arith.constant 0 : index
      %c0_15 = arith.constant 0 : index
      %16 = vector.load %arg6[%c0_14, %c0_15] : memref<8x128xf32, #tpu.memory_space<vmem>>, vector<8x128xf32>
      tpu.vector_store %arg6[%c0_14, %c0_15], %15 {strides = array<i32>} : memref<8x128xf32, #tpu.memory_space<vmem>>, vector<8x128xf32>,
    } else {
    }
    return
  }
  func.func @transform_0(%arg0: i32, %arg1: i32, %arg2: i32) -> (i32, i32) {
    %c0_i32 = arith.constant 0 : i32
    return %arg0, %arg2 : i32, i32
  }
  func.func @transform_1(%arg0: i32, %arg1: i32, %arg2: i32) -> (i32, i32) {
    %c0_i32 = arith.constant 0 : i32
    return %arg2, %arg1 : i32, i32
  }
  func.func @transform_2(%arg0: i32, %arg1: i32, %arg2: i32) -> (i32, i32) {
    %c0_i32 = arith.constant 0 : i32
    %c0_i32_0 = arith.constant 0 : i32
    return %c0_i32, %arg1 : i32, i32
  }
  func.func @transform_3(%arg0: i32, %arg1: i32, %arg2: i32) -> (i32, i32) {
    %c0_i32 = arith.constant 0 : i32
    return %arg0, %arg1 : i32, i32
  }
}

</mosaic_0001>

<llo_original>
// kernel: _mlp_forward_padded.1
$region0: #{_mlp_forward_padded.1}
  #allocation0 [shape = 'u32[]', space=smem, size = 0x4, offset = 0x4, fixed_abs, tag = 'smem constant byte address 0x4 - core index']
  #allocation1 [shape = 'u32[72,128]{1,0:T(1,128)}', space=vmem, size = 0x9000, scoped, tag = 'internal scratch']
  %s0 = inlined_call_operand.vmem [shape: f32[8,128], index: 0, kind: input, shape index: {}]
  %s1 = inlined_call_operand.hbm [shape: f32[128,128], index: 1, kind: input, shape index: {}]
  %s2 = inlined_call_operand.vmem [shape: f32[1,128], index: 2, kind: input, shape index: {}]
  %s3 = inlined_call_operand.hbm [shape: f32[8,128], index: 3, kind: output, shape index: {}]
  %s4 = sld [smem:[#allocation0]]
  $region34: #{_mlp_forward_padded.1} parent=0
    _
  %s6 = ssub.s32 1, %s4
  %s7 = scalar_select 0, %s6, %s4
  $region1: #{_mlp_forward_padded.1} parent=0
    #allocation2 [shape = 'u8[65536]{0}', space=vmem, size = 0x10000, scoped, tag = 'input window, operand 1, single buffered']
    #allocation3 [shape = 's32[1]{0}', space=sflag, size = 0x4, scoped, tag = 'scoped memory for _mlp_forward_padded.1']
    #allocation4 [shape = 's32[1]{0}', space=sflag, size = 0x4, scoped, tag = 'scoped memory for _mlp_forward_padded.1']
    #allocation5 [shape = 'u8[4096]{0}', space=vmem, size = 0x1000, scoped, tag = 'output window, operand 0, single buffered']
    %8 = vsyncpa [#allocation3], 0
    %9 = vsyncpa [#allocation4], 0
    // Predicated region
    $region2: #{_mlp_forward_padded.1} parent=1 // pred_check
      _
    $region3: #{_mlp_forward_padded.1} parent=1 // pred_check_branch
      %11 = sbr.rel (0) target = $region5
    $region4: #{_mlp_forward_padded.1} parent=1 // pred_region
      _
    $region5: #{_mlp_forward_padded.1} parent=1 // pred_fallthru
      _
    // Predicated region
    $region6: #{_mlp_forward_padded.1} parent=1 // pred_check
      _
    $region7: #{_mlp_forward_padded.1} parent=1 // pred_check_branch
      %13 = sbr.rel (0) target = $region9
    $region8: #{_mlp_forward_padded.1} parent=1 // pred_region
      %15 = vsyncadd [#allocation3], 0
      %s16 = sshll.u32 %s1, 4
      %s17 = int_to_ptr.hbm [resolvable:$true] %s16
      %s18 = sshll.u32 [#allocation2], 4
      %s19 = int_to_ptr.vmem [resolvable:$true] %s18
      %24 = dma.hbm_to_vmem [thread:$0]  %s17, 2048, %s19, [#allocation3], 128, 128, 8
    $region9: #{_mlp_forward_padded.1} parent=1 // pred_fallthru
      _
    // Predicated region
    $region10: #{_mlp_forward_padded.1} parent=1 // pred_check
      _
    $region11: #{_mlp_forward_padded.1} parent=1 // pred_check_branch
      %26 = sbr.rel (0) target = $region13
    $region12: #{_mlp_forward_padded.1} parent=1 // pred_region
      _
    $region13: #{_mlp_forward_padded.1} parent=1 // pred_fallthru
      _
    // Predicated region
    $region14: #{_mlp_forward_padded.1} parent=1 // pred_check
      _
    $region15: #{_mlp_forward_padded.1} parent=1 // pred_check_branch
      %28 = sbr.rel (0) target = $region17
    $region16: #{_mlp_forward_padded.1} parent=1 // pred_region
      %30 = dma.done [#allocation3], 2048
    $region17: #{_mlp_forward_padded.1} parent=1 // pred_fallthru
      _
    %p31 = scmp.eq.s32.totalorder 0, 0
    // Predicated region
    $region18: #{_mlp_forward_padded.1} parent=1 // pred_check
      %p32 = pneg %p31
    $region19: #{_mlp_forward_padded.1} parent=1 // pred_check_branch
      %34 = sbr.rel (%p32) target = $region21
    $region20: #{_mlp_forward_padded.1} parent=1 // pred_region
      %35 = vst [vmem:[#allocation5] sm:$0xff] 0.0
    $region21: #{_mlp_forward_padded.1} parent=1 // pred_fallthru
      _
    %v36 = vld [vmem:[#allocation5] sm:$0xff]
    %v37 = vld [vmem:[%s0] sm:$0xff]
    %v38 = vld [vmem:[#allocation2] sm:$0xff]
    %v39 = vld [vmem:[#allocation2 + $0x8] sm:$0xff]
    %v40 = vld [vmem:[#allocation2 + $0x10] sm:$0xff]
    %v41 = vld [vmem:[#allocation2 + $0x18] sm:$0xff]
    %v42 = vld [vmem:[#allocation2 + $0x20] sm:$0xff]
    %v43 = vld [vmem:[#allocation2 + $0x28] sm:$0xff]
    %v44 = vld [vmem:[#allocation2 + $0x30] sm:$0xff]
    %v45 = vld [vmem:[#allocation2 + $0x38] sm:$0xff]
    %v46 = vld [vmem:[#allocation2 + $0x40] sm:$0xff]
    %v47 = vld [vmem:[#allocation2 + $0x48] sm:$0xff]
    %v48 = vld [vmem:[#allocation2 + $0x50] sm:$0xff]
    %v49 = vld [vmem:[#allocation2 + $0x58] sm:$0xff]
    %v50 = vld [vmem:[#allocation2 + $0x60] sm:$0xff]
    %v51 = vld [vmem:[#allocation2 + $0x68] sm:$0xff]
    %v52 = vld [vmem:[#allocation2 + $0x70] sm:$0xff]
    %v53 = vld [vmem:[#allocation2 + $0x78] sm:$0xff]
    %54 = vmatpush.msra.mxu0 %v53
    %55 = vmatpush.msra.mxu0 %v52
    %56 = vmatpush.msra.mxu0 %v51
    %57 = vmatpush.msra.mxu0 %v50
    %58 = vmatpush.msra.mxu0 %v49
    %59 = vmatpush.msra.mxu0 %v48
    %60 = vmatpush.msra.mxu0 %v47
    %61 = vmatpush.msra.mxu0 %v46
    %62 = vmatpush.msra.mxu0 %v45
    %63 = vmatpush.msra.mxu0 %v44
    %64 = vmatpush.msra.mxu0 %v43
    %65 = vmatpush.msra.mxu0 %v42
    %66 = vmatpush.msra.mxu0 %v41
    %67 = vmatpush.msra.mxu0 %v40
    %68 = vmatpush.msra.mxu0 %v39
    %69 = vmatpush.msra.mxu0 %v38
    %70 = vmatmul.f32.gmra.mxu0 %v37
    %v71 = vpop.f32.mrf.mxu0
    %v72 = vadd.f32 0.0, %v71
    %73 = vdwg.mxu0
    %v74 = vadd.f32 %v36, %v72
    %75 = vst [vmem:[#allocation5] sm:$0xff] %v74
    // Predicated region
    $region22: #{_mlp_forward_padded.1} parent=1 // pred_check
      %p76 = pneg %p31
    $region23: #{_mlp_forward_padded.1} parent=1 // pred_check_branch
      %78 = sbr.rel (%p76) target = $region25
    $region24: #{_mlp_forward_padded.1} parent=1 // pred_region
      %v79 = vld [vmem:[#allocation5] sm:$0xff]
      %v80 = vld [vmem:[%s2] sm:$0x1]
      %v82 = vperm.slane %v80, 0
      %v84 = vadd.f32 %v79, %v82
      %85 = vst [vmem:[#allocation5] sm:$0xff] %v84
    $region25: #{_mlp_forward_padded.1} parent=1 // pred_fallthru
      _
    // Predicated region
    $region26: #{_mlp_forward_padded.1} parent=1 // pred_check
      _
    $region27: #{_mlp_forward_padded.1} parent=1 // pred_check_branch
      %87 = sbr.rel (0) target = $region29
    $region28: #{_mlp_forward_padded.1} parent=1 // pred_region
      %89 = vsyncadd [#allocation4], 0
      %s91 = sshll.u32 [#allocation5], 4
      %s92 = int_to_ptr.vmem [resolvable:$true] %s91
      %s93 = sshll.u32 %s3, 4
      %s94 = int_to_ptr.hbm [resolvable:$true] %s93
      %96 = dma.vmem_to_hbm [thread:$0]  %s92, 128, %s94, [#allocation4]
    $region29: #{_mlp_forward_padded.1} parent=1 // pred_fallthru
      _
    // Predicated region
    $region30: #{_mlp_forward_padded.1} parent=1 // pred_check
      _
    $region31: #{_mlp_forward_padded.1} parent=1 // pred_check_branch
      %98 = sbr.rel (0) target = $region33
    $region32: #{_mlp_forward_padded.1} parent=1 // pred_region
      %100 = dma.done [#allocation4], 128
    $region33: #{_mlp_forward_padded.1} parent=1 // pred_fallthru
      _
    %101 = vsyncpa [#allocation3], 1
    %102 = vsyncpa [#allocation4], 1

</llo_original>
